<compile_context>
chip_gen: v5e
topology: v5e:2x2
jax: 0.10.0
libtpu: 0.0.40
codegen_flags: <defaults>
</compile_context>

<pallas_src>
import functools

import jax
import jax.numpy as jnp
from jax.experimental import pallas as pl
from jax.experimental.pallas import tpu as pltpu


def _round_up(x: int, m: int) -> int:
    return ((x + m - 1) // m) * m


def bow_kernel(data_ref, length_ref, fused_ref, bias_ref, out_ref, acc_ref):
    """Grid = (batch_tiles, vocab_tiles); vocab is the (trailing) reduction axis."""
    k = pl.program_id(1)

    @pl.when(k == 0)
    def _init():
        acc_ref[...] = jnp.zeros_like(acc_ref)

    tb, seq_len = data_ref.shape
    tv = fused_ref.shape[0]
    n_strips = tv // 128
    v_base = k * tv                        # first vocab id of this grid tile

    # Token ids for this batch tile: small ((TB, L) int32), loaded once and
    # kept in vregs for the whole tile.
    data = data_ref[...]

    # Strip-/grid-invariant lane iota 0..127; the comparison is done on the
    # token side (tok - strip_base), so this never has to be re-shifted.
    lane_iota = jax.lax.broadcasted_iota(jnp.int32, (tb, 128), 1)

    # Strip-mine the vocab tile into 128-lane strips. Each counts strip is
    # <= 16 f32 vregs (TB<=128), stays register-resident across the token
    # loop, and is consumed immediately by the MXU.
    for s in range(n_strips):              # static; strip temporaries die each iter
        strip_base = v_base + s * 128
        counts = jnp.zeros((tb, 128), jnp.float32)
        if seq_len <= 32:
            # Tiny L: full static unroll, everything in registers.
            for l in range(seq_len):
                tok = data[:, l:l + 1] - strip_base        # (TB, 1) int32
                counts = counts + (tok == lane_iota).astype(jnp.float32)
        else:
            # Longer L: bounded live ranges via fori_loop with modest unroll.
            def tok_body(l, c):
                tok = jax.lax.dynamic_slice_in_dim(data, l, 1, axis=1) - strip_base
                return c + (tok == lane_iota).astype(jnp.float32)
            counts = jax.lax.fori_loop(0, seq_len, tok_body, counts, unroll=8)

        # Sum of fused embeddings over the sentence == counts @ fused.
        # Row 0 of the embedding table is zero (padding_idx=0), so padding
        # tokens contribute nothing; ids outside [0, V) simply never match.
        acc_ref[...] += jnp.dot(counts.astype(fused_ref.dtype),
                                fused_ref[s * 128:(s + 1) * 128, :],
                                preferred_element_type=jnp.float32)

    @pl.when(k == pl.num_programs(1) - 1)
    def _finalize():
        # Exact divide (matches PyTorch); length==0 -> inf/nan as in PyTorch.
        inv_len = 1.0 / length_ref[...]                    # (TB, 1)
        out_ref[...] = acc_ref[...] * inv_len + bias_ref[...]


@functools.partial(jax.jit, static_argnames=("table_dtype",))
def bag_of_words_forward(data, length, embed_table, w, b,
                         table_dtype=jnp.bfloat16):
    """data: (B, L) int ids; length: (B,); embed_table: (V, E);
    w: (E, n_cls) (= nn.Linear.weight.T); b: (n_cls,).  Returns (B, n_cls) f32.
    """
    B, L = data.shape
    V, E = embed_table.shape
    n_cls = w.shape[1]

    # bf16 counts / fused table are only exact for counts <= 256 (i.e. L<=256);
    # fall back to f32 streaming beyond that.
    if L > 256:
        table_dtype = jnp.float32

    # ---- Algebraic fusion: (counts @ embed) @ W == counts @ (embed @ W) ----
    fused = embed_table.astype(jnp.float32) @ w.astype(jnp.float32)   # (V, n_cls)

    # ---- Padding / tiling (lane axis = 128, sublane multiples of 8) ----
    OUT_PAD = 128                                   # lane-dense class axis
    TB = min(_round_up(B, 8), 128)                  # batch tile (register headroom)
    B_pad = _round_up(B, TB)
    TV = min(_round_up(V, 128), 4096)               # big vocab tile (reduction)
    V_pad = _round_up(V, TV)
    # Double-buffered fused slabs: 2 * TV * 128 * 2B = 2 MiB at TV=4096, far
    # below the scoped-VMEM default on v5e/v6e/v7x -> no vmem_limit_bytes needed.

    fused_p = (jnp.zeros((V_pad, OUT_PAD), jnp.float32)
               .at[:V, :n_cls].set(fused).astype(table_dtype))
    bias_p = (jnp.zeros((1, OUT_PAD), jnp.float32)
              .at[0, :n_cls].set(b.astype(jnp.float32)))
    data_p = jnp.zeros((B_pad, L), jnp.int32).at[:B].set(data.astype(jnp.int32))
    len_p = (jnp.ones((B_pad, 1), jnp.float32)          # padded rows: length 1
             .at[:B, 0].set(length.astype(jnp.float32)))

    grid = (B_pad // TB, V_pad // TV)

    out_padded = pl.pallas_call(
        bow_kernel,
        out_shape=jax.ShapeDtypeStruct((B_pad, OUT_PAD), jnp.float32),
        grid_spec=pltpu.PrefetchScalarGridSpec(
            num_scalar_prefetch=0,
            grid=grid,
            in_specs=[
                pl.BlockSpec((TB, L), lambda i, k: (i, 0)),        # token ids
                pl.BlockSpec((TB, 1), lambda i, k: (i, 0)),        # lengths
                pl.BlockSpec((TV, OUT_PAD), lambda i, k: (k, 0)),  # fused table
                pl.BlockSpec((1, OUT_PAD), lambda i, k: (0, 0)),   # bias
            ],
            out_specs=pl.BlockSpec((TB, OUT_PAD), lambda i, k: (i, 0)),
            scratch_shapes=[pltpu.VMEM((TB, OUT_PAD), jnp.float32)],
        ),
        compiler_params=pltpu.CompilerParams(
            dimension_semantics=("parallel", "arbitrary")),
    )(data_p, len_p, fused_p, bias_p)

    return out_padded[:B, :n_cls]


if __name__ == "__main__":
    # Small, module-consistent shapes.
    B, L = 2, 8          # batch, max sentence length
    V, E = 32, 32        # vocab size, embedding dim

    key = jax.random.PRNGKey(0)
    k_emb, k_w, k_b, k_data, k_len = jax.random.split(key, 5)

    # Deterministic parameter init (synthetic; matches module shapes).
    embed_table = jax.random.normal(k_emb, (V, E), dtype=jnp.float32)
    embed_table = embed_table.at[0].set(0.0)            # padding_idx=0 -> zero row
    w = jax.random.normal(k_w, (E, 2), dtype=jnp.float32) * 0.1   # Linear weight^T
    b = jax.random.normal(k_b, (2,), dtype=jnp.float32) * 0.1

    # Deterministic example inputs: padded token ids + true lengths.
    lengths = jax.random.randint(k_len, (B,), minval=3, maxval=L + 1)   # (B,)
    raw_ids = jax.random.randint(k_data, (B, L), minval=1, maxval=V)
    pos = jnp.arange(L)[None, :]
    data = jnp.where(pos < lengths[:, None], raw_ids, 0).astype(jnp.int32)  # 0 = pad

    out = bag_of_words_forward(data, lengths, embed_table, w, b)
    out = jax.block_until_ready(out)

    # Reference (plain JAX, full f32) check of the exact PyTorch semantics.
    ref = embed_table[data]                              # (B, L, E)
    ref = jnp.sum(ref, axis=1)                           # (B, E)
    ref = ref / lengths[:, None].astype(jnp.float32)
    ref = ref @ w + b                                    # (B, 2)
    # Tolerance covers the bf16 fused-table cast (<~1e-2 abs).
    assert jnp.allclose(out, ref, atol=2e-2, rtol=2e-2), (out, ref)

    print("KERNEL_OK")
</pallas_src>

<mosaic_0001>
module attributes {stable_mosaic.version = 11 : i64} {
  func.func @bow_kernel(%arg0: i32, %arg1: i32, %arg2: memref<8x8xi32, #tpu.memory_space<vmem>>, %arg3: memref<8x1xf32, #tpu.memory_space<vmem>>, %arg4: memref<128x128xbf16, #tpu.memory_space<vmem>>, %arg5: memref<1x128xf32, #tpu.memory_space<vmem>>, %arg6: memref<8x128xf32, #tpu.memory_space<vmem>>, %arg7: memref<8x128xf32, #tpu.memory_space<vmem>>) attributes {dimension_semantics = [#tpu.dimension_semantics<parallel>, #tpu.dimension_semantics<arbitrary>], iteration_bounds = array<i64: 1, 1>, scalar_prefetch = 0 : i64, scratch_operands = 1 : i64, tpu.core_type = #tpu.core_type<tc>, window_params = [{transform_indices = @transform_0, window_bounds = array<i64: 8, 8>}, {transform_indices = @transform_1, window_bounds = array<i64: 8, 1>}, {transform_indices = @transform_2, window_bounds = array<i64: 128, 128>}, {pipeline_mode = #tpu.pipeline_mode<synchronous>, transform_indices = @transform_3, window_bounds = array<i64: 1, 128>}, {transform_indices = @transform_4, window_bounds = array<i64: 8, 128>}]} {
    %c0_i32 = arith.constant 0 : i32
    %0 = arith.cmpi eq, %arg1, %c0_i32 : i32
    %1 = arith.extui %0 : i1 to i32
    %c0_i32_0 = arith.constant 0 : i32
    %2 = arith.cmpi ne, %1, %c0_i32_0 : i32
    scf.if %2 {
      %cst_12 = arith.constant 0.000000e+00 : f32
      %81 = vector.broadcast %cst_12 : f32 to vector<8x128xf32>
      %c0_13 = arith.constant 0 : index
      %c0_14 = arith.constant 0 : index
      %82 = vector.load %arg7[%c0_13, %c0_14] : memref<8x128xf32, #tpu.memory_space<vmem>>, vector<8x128xf32>
      tpu.vector_store %arg7[%c0_13, %c0_14], %81 {strides = array<i32>} : memref<8x128xf32, #tpu.memory_space<vmem>>, vector<8x128xf32>,
    } else {
    }
    %c128_i32 = arith.constant 128 : i32
    %3 = arith.muli %arg1, %c128_i32 : i32
    %c0 = arith.constant 0 : index
    %c0_1 = arith.constant 0 : index
    %4 = vector.load %arg2[%c0, %c0_1] : memref<8x8xi32, #tpu.memory_space<vmem>>, vector<8x8xi32>
    %5 = tpu.iota {dimensions = array<i32: 1>} : vector<8x128xi32>
    %c0_i32_2 = arith.constant 0 : i32
    %6 = arith.addi %3, %c0_i32_2 : i32
    %cst = arith.constant 0.000000e+00 : f32
    %7 = vector.broadcast %cst : f32 to vector<8x128xf32>
    %8 = vector.extract_strided_slice %4 {offsets = [0, 0], sizes = [8, 1], strides = [1, 1]} : vector<8x8xi32> to vector<8x1xi32>
    %9 = vector.broadcast %6 : i32 to vector<8x1xi32>
    %10 = arith.subi %8, %9 : vector<8x1xi32>
    %11 = vector.broadcast %10 : vector<8x1xi32> to vector<8x128xi32>
    %12 = arith.cmpi eq, %11, %5 : vector<8x128xi32>
    %13 = arith.extui %12 : vector<8x128xi1> to vector<8x128xi32>
    %14 = arith.sitofp %13 : vector<8x128xi32> to vector<8x128xf32>
    %15 = arith.addf %7, %14 : vector<8x128xf32>
    %16 = vector.extract_strided_slice %4 {offsets = [0, 1], sizes = [8, 1], strides = [1, 1]} : vector<8x8xi32> to vector<8x1xi32>
    %17 = vector.broadcast %6 : i32 to vector<8x1xi32>
    %18 = arith.subi %16, %17 : vector<8x1xi32>
    %19 = vector.broadcast %18 : vector<8x1xi32> to vector<8x128xi32>
    %20 = arith.cmpi eq, %19, %5 : vector<8x128xi32>
    %21 = arith.extui %20 : vector<8x128xi1> to vector<8x128xi32>
    %22 = arith.sitofp %21 : vector<8x128xi32> to vector<8x128xf32>
    %23 = arith.addf %15, %22 : vector<8x128xf32>
    %24 = vector.extract_strided_slice %4 {offsets = [0, 2], sizes = [8, 1], strides = [1, 1]} : vector<8x8xi32> to vector<8x1xi32>
    %25 = vector.broadcast %6 : i32 to vector<8x1xi32>
    %26 = arith.subi %24, %25 : vector<8x1xi32>
    %27 = vector.broadcast %26 : vector<8x1xi32> to vector<8x128xi32>
    %28 = arith.cmpi eq, %27, %5 : vector<8x128xi32>
    %29 = arith.extui %28 : vector<8x128xi1> to vector<8x128xi32>
    %30 = arith.sitofp %29 : vector<8x128xi32> to vector<8x128xf32>
    %31 = arith.addf %23, %30 : vector<8x128xf32>
    %32 = vector.extract_strided_slice %4 {offsets = [0, 3], sizes = [8, 1], strides = [1, 1]} : vector<8x8xi32> to vector<8x1xi32>
    %33 = vector.broadcast %6 : i32 to vector<8x1xi32>
    %34 = arith.subi %32, %33 : vector<8x1xi32>
    %35 = vector.broadcast %34 : vector<8x1xi32> to vector<8x128xi32>
    %36 = arith.cmpi eq, %35, %5 : vector<8x128xi32>
    %37 = arith.extui %36 : vector<8x128xi1> to vector<8x128xi32>
    %38 = arith.sitofp %37 : vector<8x128xi32> to vector<8x128xf32>
    %39 = arith.addf %31, %38 : vector<8x128xf32>
    %40 = vector.extract_strided_slice %4 {offsets = [0, 4], sizes = [8, 1], strides = [1, 1]} : vector<8x8xi32> to vector<8x1xi32>
    %41 = vector.broadcast %6 : i32 to vector<8x1xi32>
    %42 = arith.subi %40, %41 : vector<8x1xi32>
    %43 = vector.broadcast %42 : vector<8x1xi32> to vector<8x128xi32>
    %44 = arith.cmpi eq, %43, %5 : vector<8x128xi32>
    %45 = arith.extui %44 : vector<8x128xi1> to vector<8x128xi32>
    %46 = arith.sitofp %45 : vector<8x128xi32> to vector<8x128xf32>
    %47 = arith.addf %39, %46 : vector<8x128xf32>
    %48 = vector.extract_strided_slice %4 {offsets = [0, 5], sizes = [8, 1], strides = [1, 1]} : vector<8x8xi32> to vector<8x1xi32>
    %49 = vector.broadcast %6 : i32 to vector<8x1xi32>
    %50 = arith.subi %48, %49 : vector<8x1xi32>
    %51 = vector.broadcast %50 : vector<8x1xi32> to vector<8x128xi32>
    %52 = arith.cmpi eq, %51, %5 : vector<8x128xi32>
    %53 = arith.extui %52 : vector<8x128xi1> to vector<8x128xi32>
    %54 = arith.sitofp %53 : vector<8x128xi32> to vector<8x128xf32>
    %55 = arith.addf %47, %54 : vector<8x128xf32>
    %56 = vector.extract_strided_slice %4 {offsets = [0, 6], sizes = [8, 1], strides = [1, 1]} : vector<8x8xi32> to vector<8x1xi32>
    %57 = vector.broadcast %6 : i32 to vector<8x1xi32>
    %58 = arith.subi %56, %57 : vector<8x1xi32>
    %59 = vector.broadcast %58 : vector<8x1xi32> to vector<8x128xi32>
    %60 = arith.cmpi eq, %59, %5 : vector<8x128xi32>
    %61 = arith.extui %60 : vector<8x128xi1> to vector<8x128xi32>
    %62 = arith.sitofp %61 : vector<8x128xi32> to vector<8x128xf32>
    %63 = arith.addf %55, %62 : vector<8x128xf32>
    %64 = vector.extract_strided_slice %4 {offsets = [0, 7], sizes = [8, 1], strides = [1, 1]} : vector<8x8xi32> to vector<8x1xi32>
    %65 = vector.broadcast %6 : i32 to vector<8x1xi32>
    %66 = arith.subi %64, %65 : vector<8x1xi32>
    %67 = vector.broadcast %66 : vector<8x1xi32> to vector<8x128xi32>
    %68 = arith.cmpi eq, %67, %5 : vector<8x128xi32>
    %69 = arith.extui %68 : vector<8x128xi1> to vector<8x128xi32>
    %70 = arith.sitofp %69 : vector<8x128xi32> to vector<8x128xf32>
    %71 = arith.addf %63, %70 : vector<8x128xf32>
    %c0_3 = arith.constant 0 : index
    %c0_4 = arith.constant 0 : index
    %72 = vector.load %arg7[%c0_3, %c0_4] : memref<8x128xf32, #tpu.memory_space<vmem>>, vector<8x128xf32>
    %73 = arith.truncf %71 : vector<8x128xf32> to vector<8x128xbf16>
    %c0_5 = arith.constant 0 : index
    %c0_6 = arith.constant 0 : index
    %74 = vector.load %arg4[%c0_5, %c0_6] : memref<128x128xbf16, #tpu.memory_space<vmem>>, vector<128x128xbf16>
    %cst_7 = arith.constant dense<0.000000e+00> : vector<8x128xf32>
    %75 = tpu.matmul %73, %74, %cst_7 {dimension_numbers = #tpu.dot_dimension_numbers<[1], [0], [0], [1], [0, 0, 1, 1], [], []>} : vector<8x128xbf16>, vector<128x128xbf16>, vector<8x128xf32> -> vector<8x128xf32>
    %76 = arith.addf %72, %75 : vector<8x128xf32>
    %c0_8 = arith.constant 0 : index
    %c0_9 = arith.constant 0 : index
    %77 = vector.load %arg7[%c0_8, %c0_9] : memref<8x128xf32, #tpu.memory_space<vmem>>, vector<8x128xf32>
    tpu.vector_store %arg7[%c0_8, %c0_9], %76 {strides = array<i32>} : memref<8x128xf32, #tpu.memory_space<vmem>>, vector<8x128xf32>,
    %c0_i32_10 = arith.constant 0 : i32
    %78 = arith.cmpi eq, %arg1, %c0_i32_10 : i32
    %79 = arith.extui %78 : i1 to i32
    %c0_i32_11 = arith.constant 0 : i32
    %80 = arith.cmpi ne, %79, %c0_i32_11 : i32
    scf.if %80 {
      %c0_12 = arith.constant 0 : index
      %c0_13 = arith.constant 0 : index
      %81 = vector.load %arg3[%c0_12, %c0_13] : memref<8x1xf32, #tpu.memory_space<vmem>>, vector<8x1xf32>
      %cst_14 = arith.constant 1.000000e+00 : f32
      %82 = vector.broadcast %cst_14 : f32 to vector<8x1xf32>
      %83 = arith.divf %82, %81 : vector<8x1xf32>
      %c0_15 = arith.constant 0 : index
      %c0_16 = arith.constant 0 : index
      %84 = vector.load %arg7[%c0_15, %c0_16] : memref<8x128xf32, #tpu.memory_space<vmem>>, vector<8x128xf32>
      %85 = vector.broadcast %83 : vector<8x1xf32> to vector<8x128xf32>
      %86 = arith.mulf %84, %85 : vector<8x128xf32>
      %c0_17 = arith.constant 0 : index
      %c0_18 = arith.constant 0 : index
      %87 = vector.load %arg5[%c0_17, %c0_18] : memref<1x128xf32, #tpu.memory_space<vmem>>, vector<1x128xf32>
      %88 = vector.broadcast %87 : vector<1x128xf32> to vector<8x128xf32>
      %89 = arith.addf %86, %88 : vector<8x128xf32>
      %c0_19 = arith.constant 0 : index
      %c0_20 = arith.constant 0 : index
      %90 = vector.load %arg6[%c0_19, %c0_20] : memref<8x128xf32, #tpu.memory_space<vmem>>, vector<8x128xf32>
      tpu.vector_store %arg6[%c0_19, %c0_20], %89 {strides = array<i32>} : memref<8x128xf32, #tpu.memory_space<vmem>>, vector<8x128xf32>,
    } else {
    }
    return
  }
  func.func @transform_0(%arg0: i32, %arg1: i32) -> (i32, i32) {
    %c0_i32 = arith.constant 0 : i32
    %c0_i32_0 = arith.constant 0 : i32
    return %arg0, %c0_i32 : i32, i32
  }
  func.func @transform_1(%arg0: i32, %arg1: i32) -> (i32, i32) {
    %c0_i32 = arith.constant 0 : i32
    %c0_i32_0 = arith.constant 0 : i32
    return %arg0, %c0_i32 : i32, i32
  }
  func.func @transform_2(%arg0: i32, %arg1: i32) -> (i32, i32) {
    %c0_i32 = arith.constant 0 : i32
    %c0_i32_0 = arith.constant 0 : i32
    return %arg1, %c0_i32 : i32, i32
  }
  func.func @transform_3(%arg0: i32, %arg1: i32) -> (i32, i32) {
    %c0_i32 = arith.constant 0 : i32
    %c0_i32_0 = arith.constant 0 : i32
    %c0_i32_1 = arith.constant 0 : i32
    return %c0_i32, %c0_i32_0 : i32, i32
  }
  func.func @transform_4(%arg0: i32, %arg1: i32) -> (i32, i32) {
    %c0_i32 = arith.constant 0 : i32
    %c0_i32_0 = arith.constant 0 : i32
    return %arg0, %c0_i32 : i32, i32
  }
}

</mosaic_0001>

<llo_original>
// kernel: bag_of_words_forward.1
$region0: #{bag_of_words_forward.1}
  #allocation0 [shape = 'u32[]', space=smem, size = 0x4, offset = 0x4, fixed_abs, tag = 'smem constant byte address 0x4 - core index']
  #allocation1 [shape = 'u32[72,128]{1,0:T(1,128)}', space=vmem, size = 0x9000, scoped, tag = 'internal scratch']
  #allocation2 [shape = 'f32[8,128]{1,0:T(8,128)}', space=vmem, size = 0x1000, scoped, tag = 'scratch operand']
  %s0 = inlined_call_operand.vmem [shape: s32[8,8], index: 0, kind: input, shape index: {}]
  %s1 = inlined_call_operand.vmem [shape: f32[8,1], index: 1, kind: input, shape index: {}]
  %s2 = inlined_call_operand.vmem [shape: bf16[128,128], index: 2, kind: input, shape index: {}]
  %s3 = inlined_call_operand.vmem [shape: f32[1,128], index: 3, kind: input, shape index: {}]
  %s4 = inlined_call_operand.vmem [shape: f32[8,128], index: 4, kind: output, shape index: {}]
  %s5 = sld [smem:[#allocation0]]
  $region34: #{bag_of_words_forward.1} parent=0
    _
  %s7 = ssub.s32 1, %s5
  %s8 = scalar_select 0, %s7, %s5
  // Predicated region
  $region2: #{bag_of_words_forward.1} parent=0 // pred_check
    _
  $region3: #{bag_of_words_forward.1} parent=0 // pred_check_branch
    %10 = sbr.rel (0) target = $region5
  $region4: #{bag_of_words_forward.1} parent=0 // pred_region
    _
  $region5: #{bag_of_words_forward.1} parent=0 // pred_fallthru
    _
  // Predicated region
  $region6: #{bag_of_words_forward.1} parent=0 // pred_check
    _
  $region7: #{bag_of_words_forward.1} parent=0 // pred_check_branch
    %12 = sbr.rel (0) target = $region9
  $region8: #{bag_of_words_forward.1} parent=0 // pred_region
    _
  $region9: #{bag_of_words_forward.1} parent=0 // pred_fallthru
    _
  // Predicated region
  $region10: #{bag_of_words_forward.1} parent=0 // pred_check
    _
  $region11: #{bag_of_words_forward.1} parent=0 // pred_check_branch
    %14 = sbr.rel (0) target = $region13
  $region12: #{bag_of_words_forward.1} parent=0 // pred_region
    _
  $region13: #{bag_of_words_forward.1} parent=0 // pred_fallthru
    _
  // Predicated region
  $region14: #{bag_of_words_forward.1} parent=0 // pred_check
    _
  $region15: #{bag_of_words_forward.1} parent=0 // pred_check_branch
    %16 = sbr.rel (0) target = $region17
  $region16: #{bag_of_words_forward.1} parent=0 // pred_region
    _
  $region17: #{bag_of_words_forward.1} parent=0 // pred_fallthru
    _
  %p17 = scmp.eq.s32.totalorder 0, 0
  // Predicated region
  $region18: #{bag_of_words_forward.1} parent=0 // pred_check
    %p18 = pneg %p17
  $region19: #{bag_of_words_forward.1} parent=0 // pred_check_branch
    %20 = sbr.rel (%p18) target = $region21
  $region20: #{bag_of_words_forward.1} parent=0 // pred_region
    %21 = vst [vmem:[#allocation2] sm:$0xff] 0.0
  $region21: #{bag_of_words_forward.1} parent=0 // pred_fallthru
    _
  %s22 = smul.u32 0, 128
  %v23 = vld [vmem:[%s0] sm:$0xff]
  %v24 = vlaneseq
  %v25 = vand.u32 %v24, 127
  %v26 = vstv %s22
  %v27 = vsub.s32 %v23, %v26
  %28 = vset.pattern.permute.xlu0 0
  %29 = vperm.xlu0 %28, %v27
  %v30 = vpop.permute.xlu0 %29
  %vm31 = vcmp.eq.s32.totalorder %v30, %v25
  %v32 = vsel %vm31, 1, 0
  %v33 = vcvt.s32.f32 %v32
  %v34 = vadd.f32 %v33, 0.0
  %35 = vset.pattern.permute.xlu0 1
  %36 = vperm.xlu0 %35, %v27
  %v37 = vpop.permute.xlu0 %36
  %vm38 = vcmp.eq.s32.totalorder %v37, %v25
  %v39 = vsel %vm38, 1, 0
  %v40 = vcvt.s32.f32 %v39
  %v41 = vadd.f32 %v34, %v40
  %42 = vset.pattern.permute.xlu0 2
  %43 = vperm.xlu0 %42, %v27
  %v44 = vpop.permute.xlu0 %43
  %vm45 = vcmp.eq.s32.totalorder %v44, %v25
  %v46 = vsel %vm45, 1, 0
  %v47 = vcvt.s32.f32 %v46
  %v48 = vadd.f32 %v41, %v47
  %49 = vset.pattern.permute.xlu0 3
  %50 = vperm.xlu0 %49, %v27
  %v51 = vpop.permute.xlu0 %50
  %vm52 = vcmp.eq.s32.totalorder %v51, %v25
  %v53 = vsel %vm52, 1, 0
  %v54 = vcvt.s32.f32 %v53
  %v55 = vadd.f32 %v48, %v54
  %56 = vset.pattern.permute.xlu0 4
  %57 = vperm.xlu0 %56, %v27
  %v58 = vpop.permute.xlu0 %57
  %vm59 = vcmp.eq.s32.totalorder %v58, %v25
  %v60 = vsel %vm59, 1, 0
  %v61 = vcvt.s32.f32 %v60
  %v62 = vadd.f32 %v55, %v61
  %63 = vset.pattern.permute.xlu0 5
  %64 = vperm.xlu0 %63, %v27
  %v65 = vpop.permute.xlu0 %64
  %vm66 = vcmp.eq.s32.totalorder %v65, %v25
  %v67 = vsel %vm66, 1, 0
  %v68 = vcvt.s32.f32 %v67
  %v69 = vadd.f32 %v62, %v68
  %70 = vset.pattern.permute.xlu0 6
  %71 = vperm.xlu0 %70, %v27
  %v72 = vpop.permute.xlu0 %71
  %vm73 = vcmp.eq.s32.totalorder %v72, %v25
  %v74 = vsel %vm73, 1, 0
  %v75 = vcvt.s32.f32 %v74
  %v76 = vadd.f32 %v69, %v75
  %77 = vset.pattern.permute.xlu0 7
  %78 = vperm.xlu0 %77, %v27
  %v79 = vpop.permute.xlu0 %78
  %vm80 = vcmp.eq.s32.totalorder %v79, %v25
  %v81 = vsel %vm80, 1, 0
  %v82 = vcvt.s32.f32 %v81
  %v83 = vadd.f32 %v76, %v82
  %v84 = vld [vmem:[#allocation2] sm:$0xff]
  %v85 = vpack.c.bf16 %v83, %v83
  %v86 = vld [vmem:[%s2] sm:$0xf]
  %v87 = vld [vmem:[%s2 + $0x4] sm:$0xf]
  %v88 = vld [vmem:[%s2 + $0x8] sm:$0xf]
  %v89 = vld [vmem:[%s2 + $0xc] sm:$0xf]
  %v90 = vld [vmem:[%s2 + $0x10] sm:$0xf]
  %v91 = vld [vmem:[%s2 + $0x14] sm:$0xf]
  %v92 = vld [vmem:[%s2 + $0x18] sm:$0xf]
  %v93 = vld [vmem:[%s2 + $0x1c] sm:$0xf]
  %v94 = vld [vmem:[%s2 + $0x20] sm:$0xf]
  %v95 = vld [vmem:[%s2 + $0x24] sm:$0xf]
  %v96 = vld [vmem:[%s2 + $0x28] sm:$0xf]
  %v97 = vld [vmem:[%s2 + $0x2c] sm:$0xf]
  %v98 = vld [vmem:[%s2 + $0x30] sm:$0xf]
  %v99 = vld [vmem:[%s2 + $0x34] sm:$0xf]
  %v100 = vld [vmem:[%s2 + $0x38] sm:$0xf]
  %v101 = vld [vmem:[%s2 + $0x3c] sm:$0xf]
  %v118 = vunpack.c.l.b16 %v86
  %v119 = vunpack.c.l.b16 %v87
  %v120 = vunpack.c.l.b16 %v88
  %v121 = vunpack.c.l.b16 %v89
  %v122 = vunpack.c.l.b16 %v90
  %v123 = vunpack.c.l.b16 %v91
  %v124 = vunpack.c.l.b16 %v92
  %v125 = vunpack.c.l.b16 %v93
  %v126 = vunpack.c.l.b16 %v94
  %v127 = vunpack.c.l.b16 %v95
  %v128 = vunpack.c.l.b16 %v96
  %v129 = vunpack.c.l.b16 %v97
  %v130 = vunpack.c.l.b16 %v98
  %v131 = vunpack.c.l.b16 %v99
  %v132 = vunpack.c.l.b16 %v100
  %v133 = vunpack.c.l.b16 %v101
  %v134 = vpack.c.b16 %v119, %v118
  %v135 = vpack.c.b16 %v121, %v120
  %v136 = vpack.c.b16 %v123, %v122
  %v137 = vpack.c.b16 %v125, %v124
  %v138 = vpack.c.b16 %v127, %v126
  %v139 = vpack.c.b16 %v129, %v128
  %v140 = vpack.c.b16 %v131, %v130
  %v141 = vpack.c.b16 %v133, %v132
  %150 = vmatpush.bf16.msra.mxu0 %v141
  %151 = vmatpush.bf16.msra.mxu0 %v140
  %152 = vmatpush.bf16.msra.mxu0 %v139
  %153 = vmatpush.bf16.msra.mxu0 %v138
  %154 = vmatpush.bf16.msra.mxu0 %v137
  %155 = vmatpush.bf16.msra.mxu0 %v136
  %156 = vmatpush.bf16.msra.mxu0 %v135
  %157 = vmatpush.bf16.msra.mxu0 %v134
  %158 = vmatmul.bf16.gmra.mxu0 %v85
  %v159 = vpop.f32.mrf.mxu0
  %v160 = vadd.f32 0.0, %v159
  %v161 = vpop.f32.mrf.mxu0
  %162 = vdwg.mxu0
  %v163 = vadd.f32 %v84, %v160
  %164 = vst [vmem:[#allocation2] sm:$0xff] %v163
  // Predicated region
  $region22: #{bag_of_words_forward.1} parent=0 // pred_check
    %p165 = pneg %p17
  $region23: #{bag_of_words_forward.1} parent=0 // pred_check_branch
    %167 = sbr.rel (%p165) target = $region25
  $region24: #{bag_of_words_forward.1} parent=0 // pred_region
    %v168 = vld [vmem:[%s1] sm:$0xff]
    %v169 = vrcp.pop %v168
    %v170 = vmul.f32 %v168, %v169
    %v171 = vsub.f32 1.0, %v170
    %v172 = vmul.f32 %v169, %v171
    %v173 = vadd.f32 %v169, %v172
    %vm174 = vweird.f32 %v168
    %vm175 = vweird.f32 %v169
    %vm176 = vmor %vm174, %vm175
    %v177 = vsel %vm176, %v169, %v173
    %v178 = vand.u32 2147483647, %v168
    %vm179 = vcmp.eq.f32.partialorder %v178, 8.507059e+37
    %v180 = vand.u32 %v168, 2147483648
    %v181 = vor.u32 1.1754944e-38, %v180
    %v182 = vsel %vm179, %v181, %v177
    %v183 = vmul.f32 1.0, %v182
    %v184 = vld [vmem:[#allocation2] sm:$0xff]
    %186 = vset.pattern.permute.xlu0 0
    %187 = vperm.xlu0 %186, %v183
    %v188 = vpop.permute.xlu0 %187
    %v190 = vmul.f32 %v184, %v188
    %v191 = vld [vmem:[%s3] sm:$0x1]
    %v193 = vperm.slane %v191, 0
    %v195 = vadd.f32 %v190, %v193
    %196 = vst [vmem:[%s4] sm:$0xff] %v195
  $region25: #{bag_of_words_forward.1} parent=0 // pred_fallthru
    _
  // Predicated region
  $region26: #{bag_of_words_forward.1} parent=0 // pred_check
    _
  $region27: #{bag_of_words_forward.1} parent=0 // pred_check_branch
    %198 = sbr.rel (0) target = $region29
  $region28: #{bag_of_words_forward.1} parent=0 // pred_region
    _
  $region29: #{bag_of_words_forward.1} parent=0 // pred_fallthru
    _
  // Predicated region
  $region30: #{bag_of_words_forward.1} parent=0 // pred_check
    _
  $region31: #{bag_of_words_forward.1} parent=0 // pred_check_branch
    %200 = sbr.rel (0) target = $region33
  $region32: #{bag_of_words_forward.1} parent=0 // pred_region
    _
  $region33: #{bag_of_words_forward.1} parent=0 // pred_fallthru
    _

</llo_original>
